<compile_context>
chip_gen: v6e
topology: v6e:2x2x1
jax: 0.10.0
libtpu: 0.0.40
codegen_flags: <defaults>
</compile_context>

<pallas_src>
import functools

import jax
import jax.numpy as jnp
from jax.experimental import pallas as pl
from jax.experimental.pallas import tpu as pltpu


def _round_up(x, m):
    return ((x + m - 1) // m) * m


def _pad2d(x, rows, cols):
    r, c = x.shape
    return jnp.pad(x, ((0, rows - r), (0, cols - c)))


def graphsage_resident_kernel(featsT_ref, adjT_ref, selfT_ref,
                              w_self_ref, w_neigh_ref, w_cls_ref, out_ref):
    """1-D grid over batch tiles; whole feature table is VMEM-resident.

    featsT_ref : (F, T_pad)        feature table, transposed, resident
    adjT_ref   : (T_pad, tile_n)   row-normalized neighbor weights, transposed
    selfT_ref  : (F, tile_n)       self features of this batch tile, transposed
    w_self_ref : (E, F)            W_enc[:, :F]   (resident)
    w_neigh_ref: (E, F)            W_enc[:, F:]   (resident)
    w_cls_ref  : (C_pad8, E)       classifier weight, rows padded to 8
    out_ref    : (C_pad8, tile_n)  scores tile (== scores, pre-transpose)
    """
    # MeanAggregator: neigh_t = feats.T @ adj.T -> (F, tile_n), full-lane MXU.
    neigh_t = jnp.dot(featsT_ref[...], adjT_ref[...],
                      preferred_element_type=jnp.float32)
    # Encoder: relu(W_self @ self_t + W_neigh @ neigh_t) == relu(W_enc @ comb.T)
    h = jnp.dot(w_self_ref[...], selfT_ref[...],
                preferred_element_type=jnp.float32)
    h = h + jnp.dot(w_neigh_ref[...], neigh_t.astype(w_neigh_ref.dtype),
                    preferred_element_type=jnp.float32)
    embeds = jnp.maximum(h, 0.0)
    # Classifier: W_cls @ embeds -> (C_pad8, tile_n), lane-dense store.
    out_ref[...] = jnp.dot(w_cls_ref[...], embeds.astype(w_cls_ref.dtype),
                           preferred_element_type=jnp.float32)


def graphsage_tiled_kernel(featsT_ref, adjT_ref, selfT_ref,
                           w_self_ref, w_neigh_ref, w_cls_ref,
                           out_ref, neigh_acc):
    """2-D grid (batch tile i = parallel, table tile k = arbitrary reduction).

    featsT_ref : (F, tile_t)       feature-table tile, transposed
    adjT_ref   : (tile_t, tile_n)  adjacency tile, transposed
    neigh_acc  : (F, tile_n) f32   VMEM accumulator for the neighbor mean
    (other refs as in graphsage_resident_kernel)
    """
    k = pl.program_id(1)

    @pl.when(k == 0)
    def _():
        neigh_acc[...] = jnp.zeros_like(neigh_acc)

    neigh_acc[...] += jnp.dot(featsT_ref[...], adjT_ref[...],
                              preferred_element_type=jnp.float32)

    @pl.when(k == pl.num_programs(1) - 1)
    def _():
        h = jnp.dot(w_self_ref[...], selfT_ref[...],
                    preferred_element_type=jnp.float32)
        h = h + jnp.dot(w_neigh_ref[...],
                        neigh_acc[...].astype(w_neigh_ref.dtype),
                        preferred_element_type=jnp.float32)
        embeds = jnp.maximum(h, 0.0)
        out_ref[...] = jnp.dot(w_cls_ref[...], embeds.astype(w_cls_ref.dtype),
                               preferred_element_type=jnp.float32)


@functools.partial(jax.jit, static_argnames=("tile_n", "tile_t", "input_dtype"))
def supervised_graphsage_forward(feats, adj_norm, self_feats, w_enc, w_cls,
                                 *, tile_n=256, tile_t=2048,
                                 input_dtype=jnp.bfloat16):
    """Fused GraphSAGE layer + linear classifier. Returns scores.t() == (N, C)."""
    n, t = adj_norm.shape
    f = feats.shape[1]
    e = w_enc.shape[0]
    c = w_cls.shape[0]
    itemsize = jnp.dtype(input_dtype).itemsize

    # --- tile-size selection (all static Python ints under jit) -------------
    tile_t = max(128, _round_up(tile_t, 128))
    tile_n = max(128, min(_round_up(tile_n, 128), _round_up(n, 128)))
    # v7x megacore: keep >= 2 "parallel" batch tiles when the batch allows it.
    while tile_n > 128 and _round_up(n, tile_n) // tile_n < 2:
        tile_n //= 2
    n_pad = _round_up(n, tile_n)

    small = t <= tile_t                      # whole table fits one k-tile
    if small:
        t_pad = _round_up(max(t, 128), 128)
        kt = 1
    else:
        t_pad = _round_up(t, tile_t)
        kt = t_pad // tile_t
    c_pad = _round_up(max(c, 8), 8)          # sublane-aligned classifier rows

    # --- host-side layout: transpose, split W_enc, cast, zero-pad -----------
    featsT = _pad2d(feats.T, f, t_pad).astype(input_dtype)         # (F, T_pad)
    adjT = _pad2d(adj_norm.T, t_pad, n_pad).astype(input_dtype)    # (T_pad, N_pad)
    selfT = _pad2d(self_feats.T, f, n_pad).astype(input_dtype)     # (F, N_pad)
    w_self = w_enc[:, :f].astype(input_dtype)                      # (E, F)
    w_neigh = w_enc[:, f:].astype(input_dtype)                     # (E, F)
    w_cls_p = _pad2d(w_cls, c_pad, e).astype(input_dtype)          # (C_pad8, E)

    # --- specs / grid --------------------------------------------------------
    if small:
        grid = (n_pad // tile_n,)
        in_specs = [
            pl.BlockSpec((f, t_pad), lambda i: (0, 0)),        # feats.T resident
            pl.BlockSpec((t_pad, tile_n), lambda i: (0, i)),   # adj.T tile
            pl.BlockSpec((f, tile_n), lambda i: (0, i)),       # self.T tile
            pl.BlockSpec((e, f), lambda i: (0, 0)),            # W_self (resident)
            pl.BlockSpec((e, f), lambda i: (0, 0)),            # W_neigh (resident)
            pl.BlockSpec((c_pad, e), lambda i: (0, 0)),        # W_cls (resident)
        ]
        out_spec = pl.BlockSpec((c_pad, tile_n), lambda i: (0, i))
        scratch = ()
        kernel = graphsage_resident_kernel
        dims = ("parallel",)
        adj_tile_t = t_pad
    else:
        grid = (n_pad // tile_n, kt)
        in_specs = [
            pl.BlockSpec((f, tile_t), lambda i, k: (0, k)),
            pl.BlockSpec((tile_t, tile_n), lambda i, k: (k, i)),
            pl.BlockSpec((f, tile_n), lambda i, k: (0, i)),
            pl.BlockSpec((e, f), lambda i, k: (0, 0)),
            pl.BlockSpec((e, f), lambda i, k: (0, 0)),
            pl.BlockSpec((c_pad, e), lambda i, k: (0, 0)),
        ]
        out_spec = pl.BlockSpec((c_pad, tile_n), lambda i, k: (0, i))
        scratch = (pltpu.VMEM((f, tile_n), jnp.float32),)
        kernel = graphsage_tiled_kernel
        dims = ("parallel", "arbitrary")
        adj_tile_t = tile_t

    # --- VMEM budget derived from actual tile bytes (safe for v7x 64 MiB) ---
    vmem_needed = 0
    vmem_needed += 2 * adj_tile_t * tile_n * itemsize          # adj.T (2 bufs)
    vmem_needed += 2 * f * adj_tile_t * itemsize               # feats.T
    vmem_needed += 2 * f * tile_n * itemsize                   # self.T
    vmem_needed += 2 * c_pad * tile_n * 4                      # f32 output
    vmem_needed += 2 * (2 * e * f + c_pad * e) * itemsize      # weights
    vmem_needed += f * tile_n * 4                              # accumulator
    vmem_limit = int(min(max(2 * vmem_needed, 16 * 1024 * 1024),
                         48 * 1024 * 1024))

    out_padded = pl.pallas_call(
        kernel,
        out_shape=jax.ShapeDtypeStruct((c_pad, n_pad), jnp.float32),
        grid_spec=pltpu.PrefetchScalarGridSpec(
            num_scalar_prefetch=0,
            grid=grid,
            in_specs=in_specs,
            out_specs=out_spec,
            scratch_shapes=scratch,
        ),
        compiler_params=pltpu.CompilerParams(
            dimension_semantics=dims,
            vmem_limit_bytes=vmem_limit,
        ),
    )(featsT, adjT, selfT, w_self, w_neigh, w_cls_p)

    # scores.t() == (N, C); slice off padding.
    return out_padded[:c, :n].T


def xavier_uniform(key, shape):
    fan_out, fan_in = shape
    bound = jnp.sqrt(6.0 / (fan_in + fan_out))
    return jax.random.uniform(key, shape, jnp.float32, -bound, bound)


def _reference(feats, adj_norm, self_feats, w_enc, w_cls):
    """Pure-JAX replica of the PyTorch forward (MeanAggregator+Encoder+head)."""
    neigh = adj_norm @ feats
    comb = jnp.concatenate([self_feats, neigh], axis=1)
    embeds = jnp.maximum(w_enc @ comb.T, 0.0)      # (E, N)
    return (w_cls @ embeds).T                      # (N, C) == scores.t()


def _make_problem(key, total_nodes, num_feats, embed_dim, num_classes,
                  batch_nodes):
    k_feat, k_adj, k_enc, k_cls, k_nodes = jax.random.split(key, 5)
    feats = jax.random.normal(k_feat, (total_nodes, num_feats), jnp.float32)
    nodes = jax.random.randint(k_nodes, (batch_nodes,), 0, total_nodes)
    self_feats = feats[nodes]
    # Random sampled-neighbor structure; the harness includes a self-loop in the
    # neighbor set (gcn=True-style sampling) — the kernel semantics are the same
    # either way since it just consumes the row-normalized adjacency.
    adj = (jax.random.uniform(k_adj, (batch_nodes, total_nodes)) < 0.25).astype(
        jnp.float32)
    adj = adj.at[jnp.arange(batch_nodes), nodes].set(1.0)
    deg = jnp.maximum(jnp.sum(adj, axis=1, keepdims=True), 1.0)  # NaN guard
    adj_norm = adj / deg
    w_enc = xavier_uniform(k_enc, (embed_dim, 2 * num_feats))    # (E, 2F)
    w_cls = xavier_uniform(k_cls, (num_classes, embed_dim))      # (C, E)
    return feats, adj_norm, self_feats, w_enc, w_cls


if __name__ == "__main__":
    key = jax.random.PRNGKey(0)
    k1, k2 = jax.random.split(key)

    # --- small table: exercises the 1-D-grid VMEM-resident fast path --------
    total_nodes, num_feats, embed_dim, num_classes, batch_nodes = 64, 16, 32, 7, 8
    feats, adj_norm, self_feats, w_enc, w_cls = _make_problem(
        k1, total_nodes, num_feats, embed_dim, num_classes, batch_nodes)
    ref = _reference(feats, adj_norm, self_feats, w_enc, w_cls)

    # f32 inputs: tight numerical check.
    out_f32 = supervised_graphsage_forward(
        feats, adj_norm, self_feats, w_enc, w_cls, input_dtype=jnp.float32)
    out_f32 = jax.block_until_ready(out_f32)
    assert out_f32.shape == (batch_nodes, num_classes)
    assert jnp.allclose(out_f32, ref, atol=1e-4, rtol=1e-4), float(
        jnp.max(jnp.abs(out_f32 - ref)))

    # bf16 inputs (default, production config): looser tolerance.
    out_bf16 = supervised_graphsage_forward(
        feats, adj_norm, self_feats, w_enc, w_cls)
    out_bf16 = jax.block_until_ready(out_bf16)
    assert jnp.allclose(out_bf16, ref, atol=6e-2, rtol=6e-2), float(
        jnp.max(jnp.abs(out_bf16 - ref)))

    # --- larger table with small tile_t override: exercises the 2-D tiled
    #     (accumulator) path, still tiny enough to run instantly --------------
    total_nodes2, batch_nodes2 = 600, 40
    feats2, adj_norm2, self_feats2, w_enc2, w_cls2 = _make_problem(
        k2, total_nodes2, num_feats, embed_dim, num_classes, batch_nodes2)
    ref2 = _reference(feats2, adj_norm2, self_feats2, w_enc2, w_cls2)
    out2 = supervised_graphsage_forward(
        feats2, adj_norm2, self_feats2, w_enc2, w_cls2,
        tile_n=128, tile_t=256, input_dtype=jnp.float32)
    out2 = jax.block_until_ready(out2)
    assert out2.shape == (batch_nodes2, num_classes)
    assert jnp.allclose(out2, ref2, atol=1e-4, rtol=1e-4), float(
        jnp.max(jnp.abs(out2 - ref2)))

    # TODO(synk): CrossEntropyLoss (SupervisedGraphSage.loss) and Python-level
    # neighbor sampling / node-id gather (feats[nodes]) remain host-side glue,
    # as in the original repo.
    print("KERNEL_OK")
</pallas_src>

<mosaic_0001>
module attributes {stable_mosaic.version = 11 : i64} {
  func.func @graphsage_resident_kernel(%arg0: i32, %arg1: memref<16x128xf32, #tpu.memory_space<vmem>>, %arg2: memref<128x128xf32, #tpu.memory_space<vmem>>, %arg3: memref<16x128xf32, #tpu.memory_space<vmem>>, %arg4: memref<32x16xf32, #tpu.memory_space<vmem>>, %arg5: memref<32x16xf32, #tpu.memory_space<vmem>>, %arg6: memref<8x32xf32, #tpu.memory_space<vmem>>, %arg7: memref<8x128xf32, #tpu.memory_space<vmem>>) attributes {dimension_semantics = [#tpu.dimension_semantics<parallel>], iteration_bounds = array<i64: 1>, scalar_prefetch = 0 : i64, scratch_operands = 0 : i64, tpu.core_type = #tpu.core_type<tc>, window_params = [{pipeline_mode = #tpu.pipeline_mode<synchronous>, transform_indices = @transform_0, window_bounds = array<i64: 16, 128>}, {transform_indices = @transform_1, window_bounds = array<i64: 128, 128>}, {transform_indices = @transform_2, window_bounds = array<i64: 16, 128>}, {pipeline_mode = #tpu.pipeline_mode<synchronous>, transform_indices = @transform_3, window_bounds = array<i64: 32, 16>}, {pipeline_mode = #tpu.pipeline_mode<synchronous>, transform_indices = @transform_4, window_bounds = array<i64: 32, 16>}, {pipeline_mode = #tpu.pipeline_mode<synchronous>, transform_indices = @transform_5, window_bounds = array<i64: 8, 32>}, {transform_indices = @transform_6, window_bounds = array<i64: 8, 128>}]} {
    %c0 = arith.constant 0 : index
    %c0_0 = arith.constant 0 : index
    %0 = vector.load %arg1[%c0, %c0_0] : memref<16x128xf32, #tpu.memory_space<vmem>>, vector<16x128xf32>
    %c0_1 = arith.constant 0 : index
    %c0_2 = arith.constant 0 : index
    %1 = vector.load %arg2[%c0_1, %c0_2] : memref<128x128xf32, #tpu.memory_space<vmem>>, vector<128x128xf32>
    %cst = arith.constant dense<0.000000e+00> : vector<16x128xf32>
    %2 = tpu.matmul %0, %1, %cst {dimension_numbers = #tpu.dot_dimension_numbers<[1], [0], [0], [1], [0, 0, 1, 1], [], []>} : vector<16x128xf32>, vector<128x128xf32>, vector<16x128xf32> -> vector<16x128xf32>
    %c0_3 = arith.constant 0 : index
    %c0_4 = arith.constant 0 : index
    %3 = vector.load %arg4[%c0_3, %c0_4] : memref<32x16xf32, #tpu.memory_space<vmem>>, vector<32x16xf32>
    %c0_5 = arith.constant 0 : index
    %c0_6 = arith.constant 0 : index
    %4 = vector.load %arg3[%c0_5, %c0_6] : memref<16x128xf32, #tpu.memory_space<vmem>>, vector<16x128xf32>
    %cst_7 = arith.constant dense<0.000000e+00> : vector<32x128xf32>
    %5 = tpu.matmul %3, %4, %cst_7 {dimension_numbers = #tpu.dot_dimension_numbers<[1], [0], [0], [1], [0, 0, 1, 1], [], []>} : vector<32x16xf32>, vector<16x128xf32>, vector<32x128xf32> -> vector<32x128xf32>
    %c0_8 = arith.constant 0 : index
    %c0_9 = arith.constant 0 : index
    %6 = vector.load %arg5[%c0_8, %c0_9] : memref<32x16xf32, #tpu.memory_space<vmem>>, vector<32x16xf32>
    %cst_10 = arith.constant dense<0.000000e+00> : vector<32x128xf32>
    %7 = tpu.matmul %6, %2, %cst_10 {dimension_numbers = #tpu.dot_dimension_numbers<[1], [0], [0], [1], [0, 0, 1, 1], [], []>} : vector<32x16xf32>, vector<16x128xf32>, vector<32x128xf32> -> vector<32x128xf32>
    %8 = arith.addf %5, %7 : vector<32x128xf32>
    %cst_11 = arith.constant 0.000000e+00 : f32
    %9 = vector.broadcast %cst_11 : f32 to vector<32x128xf32>
    %10 = arith.maximumf %8, %9 : vector<32x128xf32>
    %c0_12 = arith.constant 0 : index
    %c0_13 = arith.constant 0 : index
    %11 = vector.load %arg6[%c0_12, %c0_13] : memref<8x32xf32, #tpu.memory_space<vmem>>, vector<8x32xf32>
    %cst_14 = arith.constant dense<0.000000e+00> : vector<8x128xf32>
    %12 = tpu.matmul %11, %10, %cst_14 {dimension_numbers = #tpu.dot_dimension_numbers<[1], [0], [0], [1], [0, 0, 1, 1], [], []>} : vector<8x32xf32>, vector<32x128xf32>, vector<8x128xf32> -> vector<8x128xf32>
    %c0_15 = arith.constant 0 : index
    %c0_16 = arith.constant 0 : index
    %13 = vector.load %arg7[%c0_15, %c0_16] : memref<8x128xf32, #tpu.memory_space<vmem>>, vector<8x128xf32>
    tpu.vector_store %arg7[%c0_15, %c0_16], %12 {strides = array<i32>} : memref<8x128xf32, #tpu.memory_space<vmem>>, vector<8x128xf32>,
    return
  }
  func.func @transform_0(%arg0: i32) -> (i32, i32) {
    %c0_i32 = arith.constant 0 : i32
    %c0_i32_0 = arith.constant 0 : i32
    %c0_i32_1 = arith.constant 0 : i32
    return %c0_i32, %c0_i32_0 : i32, i32
  }
  func.func @transform_1(%arg0: i32) -> (i32, i32) {
    %c0_i32 = arith.constant 0 : i32
    %c0_i32_0 = arith.constant 0 : i32
    return %c0_i32, %arg0 : i32, i32
  }
  func.func @transform_2(%arg0: i32) -> (i32, i32) {
    %c0_i32 = arith.constant 0 : i32
    %c0_i32_0 = arith.constant 0 : i32
    return %c0_i32, %arg0 : i32, i32
  }
  func.func @transform_3(%arg0: i32) -> (i32, i32) {
    %c0_i32 = arith.constant 0 : i32
    %c0_i32_0 = arith.constant 0 : i32
    %c0_i32_1 = arith.constant 0 : i32
    return %c0_i32, %c0_i32_0 : i32, i32
  }
  func.func @transform_4(%arg0: i32) -> (i32, i32) {
    %c0_i32 = arith.constant 0 : i32
    %c0_i32_0 = arith.constant 0 : i32
    %c0_i32_1 = arith.constant 0 : i32
    return %c0_i32, %c0_i32_0 : i32, i32
  }
  func.func @transform_5(%arg0: i32) -> (i32, i32) {
    %c0_i32 = arith.constant 0 : i32
    %c0_i32_0 = arith.constant 0 : i32
    %c0_i32_1 = arith.constant 0 : i32
    return %c0_i32, %c0_i32_0 : i32, i32
  }
  func.func @transform_6(%arg0: i32) -> (i32, i32) {
    %c0_i32 = arith.constant 0 : i32
    %c0_i32_0 = arith.constant 0 : i32
    return %c0_i32, %arg0 : i32, i32
  }
}

</mosaic_0001>

<llo_original>
// kernel: supervised_graphsage_forward.1
$region0: #{supervised_graphsage_forward.1}
  #allocation0 [shape = 'u32[]', space=smem, size = 0x4, offset = 0x4, fixed_abs, tag = 'smem constant byte address 0x4 - core index']
  #allocation1 [shape = 'u32[144,128]{1,0:T(1,128)}', space=vmem, size = 0x12000, scoped, tag = 'internal scratch']
  %s0 = inlined_call_operand.vmem [shape: f32[16,128], index: 0, kind: input, shape index: {}]
  %s1 = inlined_call_operand.vmem [shape: f32[128,128], index: 1, kind: input, shape index: {}]
  %s2 = inlined_call_operand.vmem [shape: f32[16,128], index: 2, kind: input, shape index: {}]
  %s3 = inlined_call_operand.vmem [shape: f32[32,16], index: 3, kind: input, shape index: {}]
  %s4 = inlined_call_operand.vmem [shape: f32[32,16], index: 4, kind: input, shape index: {}]
  %s5 = inlined_call_operand.vmem [shape: f32[8,32], index: 5, kind: input, shape index: {}]
  %s6 = inlined_call_operand.vmem [shape: f32[8,128], index: 6, kind: output, shape index: {}]
  %s7 = sld [smem:[#allocation0]]
  $region34: #{supervised_graphsage_forward.1} parent=0
    _
  %s9 = ssub.s32 1, %s7
  %s10 = scalar_select 0, %s9, %s7
  // Predicated region
  $region2: #{supervised_graphsage_forward.1} parent=0 // pred_check
    _
  $region3: #{supervised_graphsage_forward.1} parent=0 // pred_check_branch
    %12 = sbr.rel (0) target = $region5
  $region4: #{supervised_graphsage_forward.1} parent=0 // pred_region
    _
  $region5: #{supervised_graphsage_forward.1} parent=0 // pred_fallthru
    _
  // Predicated region
  $region6: #{supervised_graphsage_forward.1} parent=0 // pred_check
    _
  $region7: #{supervised_graphsage_forward.1} parent=0 // pred_check_branch
    %14 = sbr.rel (0) target = $region9
  $region8: #{supervised_graphsage_forward.1} parent=0 // pred_region
    _
  $region9: #{supervised_graphsage_forward.1} parent=0 // pred_fallthru
    _
  // Predicated region
  $region10: #{supervised_graphsage_forward.1} parent=0 // pred_check
    _
  $region11: #{supervised_graphsage_forward.1} parent=0 // pred_check_branch
    %16 = sbr.rel (0) target = $region13
  $region12: #{supervised_graphsage_forward.1} parent=0 // pred_region
    _
  $region13: #{supervised_graphsage_forward.1} parent=0 // pred_fallthru
    _
  // Predicated region
  $region14: #{supervised_graphsage_forward.1} parent=0 // pred_check
    _
  $region15: #{supervised_graphsage_forward.1} parent=0 // pred_check_branch
    %18 = sbr.rel (0) target = $region17
  $region16: #{supervised_graphsage_forward.1} parent=0 // pred_region
    _
  $region17: #{supervised_graphsage_forward.1} parent=0 // pred_fallthru
    _
  // Predicated region
  $region18: #{supervised_graphsage_forward.1} parent=0 // pred_check
    _
  $region19: #{supervised_graphsage_forward.1} parent=0 // pred_check_branch
    %20 = sbr.rel (0) target = $region21
  $region20: #{supervised_graphsage_forward.1} parent=0 // pred_region
    _
  $region21: #{supervised_graphsage_forward.1} parent=0 // pred_fallthru
    _
  // Predicated region
  $region22: #{supervised_graphsage_forward.1} parent=0 // pred_check
    _
  $region23: #{supervised_graphsage_forward.1} parent=0 // pred_check_branch
    %22 = sbr.rel (0) target = $region25
  $region24: #{supervised_graphsage_forward.1} parent=0 // pred_region
    _
  $region25: #{supervised_graphsage_forward.1} parent=0 // pred_fallthru
    _
  %v23 = vld [vmem:[%s0] sm:$0xff]
  %v24 = vld [vmem:[%s0 + $0x8] sm:$0xff]
  %v25 = vld [vmem:[%s1] sm:$0xff]
  %v26 = vld [vmem:[%s1 + $0x8] sm:$0xff]
  %v27 = vld [vmem:[%s1 + $0x10] sm:$0xff]
  %v28 = vld [vmem:[%s1 + $0x18] sm:$0xff]
  %v29 = vld [vmem:[%s1 + $0x20] sm:$0xff]
  %v30 = vld [vmem:[%s1 + $0x28] sm:$0xff]
  %v31 = vld [vmem:[%s1 + $0x30] sm:$0xff]
  %v32 = vld [vmem:[%s1 + $0x38] sm:$0xff]
  %v33 = vld [vmem:[%s1 + $0x40] sm:$0xff]
  %v34 = vld [vmem:[%s1 + $0x48] sm:$0xff]
  %v35 = vld [vmem:[%s1 + $0x50] sm:$0xff]
  %v36 = vld [vmem:[%s1 + $0x58] sm:$0xff]
  %v37 = vld [vmem:[%s1 + $0x60] sm:$0xff]
  %v38 = vld [vmem:[%s1 + $0x68] sm:$0xff]
  %v39 = vld [vmem:[%s1 + $0x70] sm:$0xff]
  %v40 = vld [vmem:[%s1 + $0x78] sm:$0xff]
  %41 = vmatprep.subr.mxu0 0.0
  %42 = vmatpush1.msra.mxu0 %v40
  %43 = vmatprep.subr.mxu0 0.0
  %44 = vmatpush1.msra.mxu0 %v39
  %45 = vmatprep.subr.mxu0 0.0
  %46 = vmatpush1.msra.mxu0 %v38
  %47 = vmatprep.subr.mxu0 0.0
  %48 = vmatpush1.msra.mxu0 %v37
  %49 = vmatprep.subr.mxu0 0.0
  %50 = vmatpush1.msra.mxu0 %v36
  %51 = vmatprep.subr.mxu0 0.0
  %52 = vmatpush1.msra.mxu0 %v35
  %53 = vmatprep.subr.mxu0 0.0
  %54 = vmatpush1.msra.mxu0 %v34
  %55 = vmatprep.subr.mxu0 0.0
  %56 = vmatpush1.msra.mxu0 %v33
  %57 = vmatprep.subr.mxu0 0.0
  %58 = vmatpush1.msra.mxu0 %v32
  %59 = vmatprep.subr.mxu0 0.0
  %60 = vmatpush1.msra.mxu0 %v31
  %61 = vmatprep.subr.mxu0 0.0
  %62 = vmatpush1.msra.mxu0 %v30
  %63 = vmatprep.subr.mxu0 0.0
  %64 = vmatpush1.msra.mxu0 %v29
  %65 = vmatprep.subr.mxu0 0.0
  %66 = vmatpush1.msra.mxu0 %v28
  %67 = vmatprep.subr.mxu0 0.0
  %68 = vmatpush1.msra.mxu0 %v27
  %69 = vmatprep.subr.mxu0 0.0
  %70 = vmatpush1.msra.mxu0 %v26
  %71 = vmatprep.subr.mxu0 0.0
  %72 = vmatpush1.msra.mxu0 %v25
  %73 = vmatprep.subr.mxu0 0.0
  %74 = vmatpush2.msra.mxu0 0.0
  %75 = vmatprep.subr.mxu0 0.0
  %76 = vmatpush2.msra.mxu0 0.0
  %77 = vmatprep.subr.mxu0 0.0
  %78 = vmatpush2.msra.mxu0 0.0
  %79 = vmatprep.subr.mxu0 0.0
  %80 = vmatpush2.msra.mxu0 0.0
  %81 = vmatprep.subr.mxu0 0.0
  %82 = vmatpush2.msra.mxu0 0.0
  %83 = vmatprep.subr.mxu0 0.0
  %84 = vmatpush2.msra.mxu0 0.0
  %85 = vmatprep.subr.mxu0 0.0
  %86 = vmatpush2.msra.mxu0 0.0
  %87 = vmatprep.subr.mxu0 0.0
  %88 = vmatpush2.msra.mxu0 0.0
  %89 = vmatprep.subr.mxu0 0.0
  %90 = vmatpush2.msra.mxu0 0.0
  %91 = vmatprep.subr.mxu0 0.0
  %92 = vmatpush2.msra.mxu0 0.0
  %93 = vmatprep.subr.mxu0 0.0
  %94 = vmatpush2.msra.mxu0 0.0
  %95 = vmatprep.subr.mxu0 0.0
  %96 = vmatpush2.msra.mxu0 0.0
  %97 = vmatprep.subr.mxu0 0.0
  %98 = vmatpush2.msra.mxu0 0.0
  %99 = vmatprep.subr.mxu0 0.0
  %100 = vmatpush2.msra.mxu0 0.0
  %101 = vmatprep.subr.mxu0 0.0
  %102 = vmatpush2.msra.mxu0 0.0
  %103 = vmatprep.subr.mxu0 0.0
  %104 = vmatpush2.msra.mxu0 0.0
  %105 = vmatprep.mubr.f32.mxu0 0.0
  %106 = vmatmul.mubr.f32.gmra.mxu0 %v23
  %v107 = vpop.f32.mrf.mxu0
  %v108 = vadd.f32 0.0, %v107
  %v109 = vpop.f32.mrf.mxu0
  %110 = vmatprep.mubr.f32.mxu0 0.0
  %111 = vmatmul.mubr.f32.gmra.mxu0 %v24
  %v112 = vpop.f32.mrf.mxu0
  %v113 = vadd.f32 0.0, %v112
  %v114 = vpop.f32.mrf.mxu0
  %115 = vdwg.mxu0
  %v116 = vld [vmem:[%s3] sm:$0xff]
  %v117 = vld [vmem:[%s3 + $0x8] sm:$0xff]
  %v118 = vld [vmem:[%s3 + $0x10] sm:$0xff]
  %v119 = vld [vmem:[%s3 + $0x18] sm:$0xff]
  %v120 = vld [vmem:[%s2] sm:$0xff]
  %v121 = vld [vmem:[%s2 + $0x8] sm:$0xff]
  %v122 = vld [vmem:[%s4] sm:$0xff]
  %v123 = vld [vmem:[%s4 + $0x8] sm:$0xff]
  %v124 = vld [vmem:[%s4 + $0x10] sm:$0xff]
  %v125 = vld [vmem:[%s4 + $0x18] sm:$0xff]
  %vm126 = vcmask 130048
  %v128 = vsel %vm126, %v122, 0
  %v131 = vsel %vm126, %v123, 0
  %v134 = vsel %vm126, %v124, 0
  %v137 = vsel %vm126, %v125, 0
  %139 = vmatprep.subr.mxu0 0.0
  %140 = vmatpush1.msra.mxu0 0.0
  %141 = vmatprep.subr.mxu0 0.0
  %142 = vmatpush1.msra.mxu0 0.0
  %143 = vmatprep.subr.mxu0 0.0
  %144 = vmatpush1.msra.mxu0 0.0
  %145 = vmatprep.subr.mxu0 0.0
  %146 = vmatpush1.msra.mxu0 0.0
  %147 = vmatprep.subr.mxu0 0.0
  %148 = vmatpush1.msra.mxu0 0.0
  %149 = vmatprep.subr.mxu0 0.0
  %150 = vmatpush1.msra.mxu0 0.0
  %151 = vmatprep.subr.mxu0 0.0
  %152 = vmatpush1.msra.mxu0 0.0
  %153 = vmatprep.subr.mxu0 0.0
  %154 = vmatpush1.msra.mxu0 0.0
  %155 = vmatprep.subr.mxu0 0.0
  %156 = vmatpush1.msra.mxu0 0.0
  %157 = vmatprep.subr.mxu0 0.0
  %158 = vmatpush1.msra.mxu0 0.0
  %159 = vmatprep.subr.mxu0 0.0
  %160 = vmatpush1.msra.mxu0 0.0
  %161 = vmatprep.subr.mxu0 0.0
  %162 = vmatpush1.msra.mxu0 0.0
  %163 = vmatprep.subr.mxu0 0.0
  %164 = vmatpush1.msra.mxu0 0.0
  %165 = vmatprep.subr.mxu0 0.0
  %166 = vmatpush1.msra.mxu0 0.0
  %167 = vmatprep.subr.mxu0 0.0
  %168 = vmatpush1.msra.mxu0 %v113
  %169 = vmatprep.subr.mxu0 0.0
  %170 = vmatpush1.msra.mxu0 %v108
  %171 = vmatprep.subr.mxu0 0.0
  %172 = vmatpush2.msra.mxu0 0.0
  %173 = vmatprep.subr.mxu0 0.0
  %174 = vmatpush2.msra.mxu0 0.0
  %175 = vmatprep.subr.mxu0 0.0
  %176 = vmatpush2.msra.mxu0 0.0
  %177 = vmatprep.subr.mxu0 0.0
  %178 = vmatpush2.msra.mxu0 0.0
  %179 = vmatprep.subr.mxu0 0.0
  %180 = vmatpush2.msra.mxu0 0.0
  %181 = vmatprep.subr.mxu0 0.0
  %182 = vmatpush2.msra.mxu0 0.0
  %183 = vmatprep.subr.mxu0 0.0
  %184 = vmatpush2.msra.mxu0 0.0
  %185 = vmatprep.subr.mxu0 0.0
  %186 = vmatpush2.msra.mxu0 0.0
  %187 = vmatprep.subr.mxu0 0.0
  %188 = vmatpush2.msra.mxu0 0.0
  %189 = vmatprep.subr.mxu0 0.0
  %190 = vmatpush2.msra.mxu0 0.0
  %191 = vmatprep.subr.mxu0 0.0
  %192 = vmatpush2.msra.mxu0 0.0
  %193 = vmatprep.subr.mxu0 0.0
  %194 = vmatpush2.msra.mxu0 0.0
  %195 = vmatprep.subr.mxu0 0.0
  %196 = vmatpush2.msra.mxu0 0.0
  %197 = vmatprep.subr.mxu0 0.0
  %198 = vmatpush2.msra.mxu0 0.0
  %199 = vmatprep.subr.mxu0 0.0
  %200 = vmatpush2.msra.mxu0 0.0
  %201 = vmatprep.subr.mxu0 0.0
  %202 = vmatpush2.msra.mxu0 0.0
  %203 = vmatprep.mubr.f32.mxu0 0.0
  %204 = vmatmul.mubr.f32.gmra.mxu0 %v128
  %v205 = vpop.f32.mrf.mxu0
  %v206 = vadd.f32 0.0, %v205
  %v207 = vpop.f32.mrf.mxu0
  %208 = vmatprep.mubr.f32.mxu0 0.0
  %209 = vmatmul.mubr.f32.gmra.mxu0 %v131
  %v210 = vpop.f32.mrf.mxu0
  %v211 = vadd.f32 0.0, %v210
  %v212 = vpop.f32.mrf.mxu0
  %213 = vmatprep.mubr.f32.mxu0 0.0
  %214 = vmatmul.mubr.f32.gmra.mxu0 %v134
  %v215 = vpop.f32.mrf.mxu0
  %v216 = vadd.f32 0.0, %v215
  %v217 = vpop.f32.mrf.mxu0
  %218 = vmatprep.mubr.f32.mxu0 0.0
  %219 = vmatmul.mubr.f32.gmra.mxu0 %v137
  %v220 = vpop.f32.mrf.mxu0
  %v221 = vadd.f32 0.0, %v220
  %v222 = vpop.f32.mrf.mxu0
  %223 = vdwg.mxu0
  %v225 = vsel %vm126, %v116, 0
  %v228 = vsel %vm126, %v117, 0
  %v231 = vsel %vm126, %v118, 0
  %v234 = vsel %vm126, %v119, 0
  %236 = vmatprep.subr.mxu0 0.0
  %237 = vmatpush1.msra.mxu0 0.0
  %238 = vmatprep.subr.mxu0 0.0
  %239 = vmatpush1.msra.mxu0 0.0
  %240 = vmatprep.subr.mxu0 0.0
  %241 = vmatpush1.msra.mxu0 0.0
  %242 = vmatprep.subr.mxu0 0.0
  %243 = vmatpush1.msra.mxu0 0.0
  %244 = vmatprep.subr.mxu0 0.0
  %245 = vmatpush1.msra.mxu0 0.0
  %246 = vmatprep.subr.mxu0 0.0
  %247 = vmatpush1.msra.mxu0 0.0
  %248 = vmatprep.subr.mxu0 0.0
  %249 = vmatpush1.msra.mxu0 0.0
  %250 = vmatprep.subr.mxu0 0.0
  %251 = vmatpush1.msra.mxu0 0.0
  %252 = vmatprep.subr.mxu0 0.0
  %253 = vmatpush1.msra.mxu0 0.0
  %254 = vmatprep.subr.mxu0 0.0
  %255 = vmatpush1.msra.mxu0 0.0
  %256 = vmatprep.subr.mxu0 0.0
  %257 = vmatpush1.msra.mxu0 0.0
  %258 = vmatprep.subr.mxu0 0.0
  %259 = vmatpush1.msra.mxu0 0.0
  %260 = vmatprep.subr.mxu0 0.0
  %261 = vmatpush1.msra.mxu0 0.0
  %262 = vmatprep.subr.mxu0 0.0
  %263 = vmatpush1.msra.mxu0 0.0
  %264 = vmatprep.subr.mxu0 0.0
  %265 = vmatpush1.msra.mxu0 %v121
  %266 = vmatprep.subr.mxu0 0.0
  %267 = vmatpush1.msra.mxu0 %v120
  %268 = vmatprep.subr.mxu0 0.0
  %269 = vmatpush2.msra.mxu0 0.0
  %270 = vmatprep.subr.mxu0 0.0
  %271 = vmatpush2.msra.mxu0 0.0
  %272 = vmatprep.subr.mxu0 0.0
  %273 = vmatpush2.msra.mxu0 0.0
  %274 = vmatprep.subr.mxu0 0.0
  %275 = vmatpush2.msra.mxu0 0.0
  %276 = vmatprep.subr.mxu0 0.0
  %277 = vmatpush2.msra.mxu0 0.0
  %278 = vmatprep.subr.mxu0 0.0
  %279 = vmatpush2.msra.mxu0 0.0
  %280 = vmatprep.subr.mxu0 0.0
  %281 = vmatpush2.msra.mxu0 0.0
  %282 = vmatprep.subr.mxu0 0.0
  %283 = vmatpush2.msra.mxu0 0.0
  %284 = vmatprep.subr.mxu0 0.0
  %285 = vmatpush2.msra.mxu0 0.0
  %286 = vmatprep.subr.mxu0 0.0
  %287 = vmatpush2.msra.mxu0 0.0
  %288 = vmatprep.subr.mxu0 0.0
  %289 = vmatpush2.msra.mxu0 0.0
  %290 = vmatprep.subr.mxu0 0.0
  %291 = vmatpush2.msra.mxu0 0.0
  %292 = vmatprep.subr.mxu0 0.0
  %293 = vmatpush2.msra.mxu0 0.0
  %294 = vmatprep.subr.mxu0 0.0
  %295 = vmatpush2.msra.mxu0 0.0
  %296 = vmatprep.subr.mxu0 0.0
  %297 = vmatpush2.msra.mxu0 0.0
  %298 = vmatprep.subr.mxu0 0.0
  %299 = vmatpush2.msra.mxu0 0.0
  %300 = vmatprep.mubr.f32.mxu0 0.0
  %301 = vmatmul.mubr.f32.gmra.mxu0 %v225
  %v302 = vpop.f32.mrf.mxu0
  %v303 = vadd.f32 %v206, %v302
  %v304 = vpop.f32.mrf.mxu0
  %305 = vmatprep.mubr.f32.mxu0 0.0
  %306 = vmatmul.mubr.f32.gmra.mxu0 %v228
  %v307 = vpop.f32.mrf.mxu0
  %v308 = vadd.f32 %v211, %v307
  %v309 = vpop.f32.mrf.mxu0
  %310 = vmatprep.mubr.f32.mxu0 0.0
  %311 = vmatmul.mubr.f32.gmra.mxu0 %v231
  %v312 = vpop.f32.mrf.mxu0
  %v313 = vadd.f32 %v216, %v312
  %v314 = vpop.f32.mrf.mxu0
  %315 = vmatprep.mubr.f32.mxu0 0.0
  %316 = vmatmul.mubr.f32.gmra.mxu0 %v234
  %v317 = vpop.f32.mrf.mxu0
  %v318 = vadd.f32 %v221, %v317
  %v319 = vpop.f32.mrf.mxu0
  %320 = vdwg.mxu0
  %v321 = vmax.f32 %v303, 0.0
  %v322 = vmax.f32 %v308, 0.0
  %v323 = vmax.f32 %v313, 0.0
  %v324 = vmax.f32 %v318, 0.0
  %v325 = vld [vmem:[%s5] sm:$0xff]
  %vm326 = vcmask 261120
  %v328 = vsel %vm326, %v325, 0
  %330 = vmatprep.subr.mxu0 0.0
  %331 = vmatpush1.msra.mxu0 0.0
  %332 = vmatprep.subr.mxu0 0.0
  %333 = vmatpush1.msra.mxu0 0.0
  %334 = vmatprep.subr.mxu0 0.0
  %335 = vmatpush1.msra.mxu0 0.0
  %336 = vmatprep.subr.mxu0 0.0
  %337 = vmatpush1.msra.mxu0 0.0
  %338 = vmatprep.subr.mxu0 0.0
  %339 = vmatpush1.msra.mxu0 0.0
  %340 = vmatprep.subr.mxu0 0.0
  %341 = vmatpush1.msra.mxu0 0.0
  %342 = vmatprep.subr.mxu0 0.0
  %343 = vmatpush1.msra.mxu0 0.0
  %344 = vmatprep.subr.mxu0 0.0
  %345 = vmatpush1.msra.mxu0 0.0
  %346 = vmatprep.subr.mxu0 0.0
  %347 = vmatpush1.msra.mxu0 0.0
  %348 = vmatprep.subr.mxu0 0.0
  %349 = vmatpush1.msra.mxu0 0.0
  %350 = vmatprep.subr.mxu0 0.0
  %351 = vmatpush1.msra.mxu0 0.0
  %352 = vmatprep.subr.mxu0 0.0
  %353 = vmatpush1.msra.mxu0 0.0
  %354 = vmatprep.subr.mxu0 0.0
  %355 = vmatpush1.msra.mxu0 %v324
  %356 = vmatprep.subr.mxu0 0.0
  %357 = vmatpush1.msra.mxu0 %v323
  %358 = vmatprep.subr.mxu0 0.0
  %359 = vmatpush1.msra.mxu0 %v322
  %360 = vmatprep.subr.mxu0 0.0
  %361 = vmatpush1.msra.mxu0 %v321
  %362 = vmatprep.subr.mxu0 0.0
  %363 = vmatpush2.msra.mxu0 0.0
  %364 = vmatprep.subr.mxu0 0.0
  %365 = vmatpush2.msra.mxu0 0.0
  %366 = vmatprep.subr.mxu0 0.0
  %367 = vmatpush2.msra.mxu0 0.0
  %368 = vmatprep.subr.mxu0 0.0
  %369 = vmatpush2.msra.mxu0 0.0
  %370 = vmatprep.subr.mxu0 0.0
  %371 = vmatpush2.msra.mxu0 0.0
  %372 = vmatprep.subr.mxu0 0.0
  %373 = vmatpush2.msra.mxu0 0.0
  %374 = vmatprep.subr.mxu0 0.0
  %375 = vmatpush2.msra.mxu0 0.0
  %376 = vmatprep.subr.mxu0 0.0
  %377 = vmatpush2.msra.mxu0 0.0
  %378 = vmatprep.subr.mxu0 0.0
  %379 = vmatpush2.msra.mxu0 0.0
  %380 = vmatprep.subr.mxu0 0.0
  %381 = vmatpush2.msra.mxu0 0.0
  %382 = vmatprep.subr.mxu0 0.0
  %383 = vmatpush2.msra.mxu0 0.0
  %384 = vmatprep.subr.mxu0 0.0
  %385 = vmatpush2.msra.mxu0 0.0
  %386 = vmatprep.subr.mxu0 0.0
  %387 = vmatpush2.msra.mxu0 0.0
  %388 = vmatprep.subr.mxu0 0.0
  %389 = vmatpush2.msra.mxu0 0.0
  %390 = vmatprep.subr.mxu0 0.0
  %391 = vmatpush2.msra.mxu0 0.0
  %392 = vmatprep.subr.mxu0 0.0
  %393 = vmatpush2.msra.mxu0 0.0
  %394 = vmatprep.mubr.f32.mxu0 0.0
  %395 = vmatmul.mubr.f32.gmra.mxu0 %v328
  %v396 = vpop.f32.mrf.mxu0
  %v397 = vadd.f32 0.0, %v396
  %v398 = vpop.f32.mrf.mxu0
  %399 = vdwg.mxu0
  %400 = vst [vmem:[%s6] sm:$0xff] %v397
  // Predicated region
  $region26: #{supervised_graphsage_forward.1} parent=0 // pred_check
    _
  $region27: #{supervised_graphsage_forward.1} parent=0 // pred_check_branch
    %402 = sbr.rel (0) target = $region29
  $region28: #{supervised_graphsage_forward.1} parent=0 // pred_region
    _
  $region29: #{supervised_graphsage_forward.1} parent=0 // pred_fallthru
    _
  // Predicated region
  $region30: #{supervised_graphsage_forward.1} parent=0 // pred_check
    _
  $region31: #{supervised_graphsage_forward.1} parent=0 // pred_check_branch
    %404 = sbr.rel (0) target = $region33
  $region32: #{supervised_graphsage_forward.1} parent=0 // pred_region
    _
  $region33: #{supervised_graphsage_forward.1} parent=0 // pred_fallthru
    _

</llo_original>
